<compile_context>
chip_gen: v5e
topology: v5e:2x2
jax: 0.10.0
libtpu: 0.0.40
codegen_flags: <defaults>
</compile_context>

<pallas_src>
import functools

import jax
import jax.numpy as jnp
from jax.experimental import pallas as pl
from jax.experimental.pallas import tpu as pltpu


def _round_up(x, m):
    return (x + m - 1) // m * m


def decoder_block_kernel(x_ref, w1_ref, w2_ref, gamma_ref, beta_ref, o_ref):
    # x_ref: (tm, feat_in)          native dtype (f32 or bf16)
    # w1_ref: (feat_in, feat_hid)   native dtype (pre-transposed once, not per call)
    # w2_ref: (feat_hid, feat_out)  native dtype
    # gamma_ref / beta_ref: (1, feat_out)
    x = x_ref[...]  # no upcast: keep the MXU on the native-dtype fast path

    # fc1 + ReLU (f32 accumulation on the MXU)
    h = jnp.dot(x, w1_ref[...], preferred_element_type=jnp.float32)
    h = jnp.maximum(h, 0.0).astype(w2_ref.dtype)  # back to native dtype for matmul #2

    # fc2 + ReLU
    y = jnp.dot(h, w2_ref[...], preferred_element_type=jnp.float32)
    y = jnp.maximum(y, 0.0)

    # LayerNorm over the feature axis, eps = 1e-5 — single-pass statistics:
    # one sum and one sum-of-squares instead of two separate mean reductions.
    inv_n = jnp.float32(1.0 / y.shape[-1])
    s1 = jnp.sum(y, axis=-1, keepdims=True)
    s2 = jnp.sum(y * y, axis=-1, keepdims=True)
    mean = s1 * inv_n
    var = jnp.maximum(s2 * inv_n - mean * mean, 0.0)
    y_norm = (y - mean) * jax.lax.rsqrt(var + 1e-5)

    out = y_norm * gamma_ref[...].astype(jnp.float32) + beta_ref[...].astype(jnp.float32)
    o_ref[...] = out.astype(o_ref.dtype)


@functools.lru_cache(maxsize=None)
def _build_call(Bp, tm, feat_in, feat_hid, feat_out, dtype_name, single_buffer_weights):
    dtype = jnp.dtype(dtype_name)
    itemsize = dtype.itemsize

    weight_spec_kwargs = (
        dict(pipeline_mode=pl.Buffered(1)) if single_buffer_weights else {}
    )

    # VMEM footprint estimate: weight buffers + double-buffered x/out tiles
    # + f32 intermediates (h, y) + gamma/beta.
    n_wbuf = 1 if single_buffer_weights else 2
    est = (
        n_wbuf * (feat_in * feat_hid + feat_hid * feat_out) * itemsize
        + 2 * tm * (feat_in + feat_out) * itemsize
        + tm * (feat_hid + feat_out) * 4
        + 4 * feat_out * 4
    )
    vmem_limit = int(min(56 * 2 ** 20, max(32 * 2 ** 20, 2 * est)))

    grid_spec = pltpu.PrefetchScalarGridSpec(
        num_scalar_prefetch=0,
        grid=(Bp // tm,),
        in_specs=[
            pl.BlockSpec((tm, feat_in), lambda i: (i, 0)),
            pl.BlockSpec((feat_in, feat_hid), lambda i: (0, 0), **weight_spec_kwargs),
            pl.BlockSpec((feat_hid, feat_out), lambda i: (0, 0), **weight_spec_kwargs),
            pl.BlockSpec((1, feat_out), lambda i: (0, 0)),
            pl.BlockSpec((1, feat_out), lambda i: (0, 0)),
        ],
        # Full feat_out on the lane axis (lane-dense when feat_out >= 128).
        out_specs=pl.BlockSpec((tm, feat_out), lambda i: (i, 0)),
    )
    return pl.pallas_call(
        decoder_block_kernel,
        out_shape=jax.ShapeDtypeStruct((Bp, feat_out), dtype),
        grid_spec=grid_spec,
        compiler_params=pltpu.CompilerParams(
            dimension_semantics=("parallel",),
            vmem_limit_bytes=vmem_limit,
        ),
    )


def prepare_decoder_params(w1, w2, gamma, beta):
    """One-time conversion of PyTorch-layout parameters.

    w1: (feat_hid, feat_in), w2: (feat_out, feat_hid)  [nn.Linear (out, in) layout]
    Returns (in, out)-layout weights so the per-call path never pays a transpose.
    """
    return w1.T, w2.T, gamma, beta


def decoder_block_dense(x, w1_io, w2_io, gamma, beta, *, tm=None):
    """Fused fc1 + ReLU + fc2 + ReLU + LayerNorm.

    x:      (B, feat_in)
    w1_io:  (feat_in, feat_hid)   -- already (in, out) layout (prepare_decoder_params)
    w2_io:  (feat_hid, feat_out)
    gamma, beta: (feat_out,)
    """
    B, feat_in = x.shape
    feat_hid = w1_io.shape[1]
    feat_out = w2_io.shape[1]
    assert w1_io.shape == (feat_in, feat_hid)
    assert w2_io.shape == (feat_hid, feat_out)

    if tm is None:
        # Cap the batch tile: bounded VMEM, a multi-step pipeline, and (on v7x)
        # enough grid steps for both TensorCores.
        tm = min(256, _round_up(B, 8))
    Bp = _round_up(B, tm)
    xp = x if Bp == B else jnp.pad(x, ((0, Bp - B), (0, 0)))

    gamma2d = gamma.reshape(1, feat_out)
    beta2d = beta.reshape(1, feat_out)
    dtype_name = jnp.dtype(x.dtype).name

    def run(single_buffer_weights):
        call = _build_call(Bp, tm, feat_in, feat_hid, feat_out,
                           dtype_name, single_buffer_weights)
        return call(xp, w1_io, w2_io, gamma2d, beta2d)

    try:
        out = run(True)
    except Exception:
        # Fall back to default double-buffered weights if this JAX build does
        # not accept single-buffered (Buffered(1)) input blocks.
        out = run(False)

    return out if Bp == B else out[:B]


def reference(x, w1, w2, gamma, beta):
    # Pure-JAX reference using the original PyTorch (out, in) weight layout.
    h = jnp.maximum(x @ w1.T, 0.0)
    y = jnp.maximum(h @ w2.T, 0.0)
    mean = jnp.mean(y, axis=-1, keepdims=True)
    var = jnp.mean((y - mean) ** 2, axis=-1, keepdims=True)
    return (y - mean) / jnp.sqrt(var + 1e-5) * gamma + beta


if __name__ == "__main__":
    # Small shapes consistent with the module: batch=8, feat_in=32, feat_out=64
    B, feat_in, feat_out = 8, 32, 64
    feat_hid = feat_out // 2

    key = jax.random.PRNGKey(0)
    kx, kw1, kw2 = jax.random.split(key, 3)

    x = jax.random.normal(kx, (B, feat_in), dtype=jnp.float32)
    # Deterministic synthetic weights (PyTorch Linear layout: (out, in))
    w1 = jax.random.normal(kw1, (feat_hid, feat_in), dtype=jnp.float32) * (1.0 / feat_in ** 0.5)
    w2 = jax.random.normal(kw2, (feat_out, feat_hid), dtype=jnp.float32) * (1.0 / feat_hid ** 0.5)
    # LayerNorm init: gamma=1, beta=0 (nn.LayerNorm defaults)
    gamma = jnp.ones((feat_out,), dtype=jnp.float32)
    beta = jnp.zeros((feat_out,), dtype=jnp.float32)

    # One-time parameter prep: transposes happen HERE, not on every forward call.
    w1_io, w2_io, gamma_p, beta_p = prepare_decoder_params(w1, w2, gamma, beta)
    w1_io = jax.block_until_ready(w1_io)
    w2_io = jax.block_until_ready(w2_io)

    out = decoder_block_dense(x, w1_io, w2_io, gamma_p, beta_p)
    out = jax.block_until_ready(out)

    ref = reference(x, w1, w2, gamma, beta)
    assert out.shape == (B, feat_out)
    assert jnp.allclose(out, ref, atol=1e-4, rtol=1e-4), "mismatch vs reference"

    print("KERNEL_OK")
</pallas_src>

<mosaic_0001>
module attributes {stable_mosaic.version = 11 : i64} {
  func.func @decoder_block_kernel(%arg0: i32, %arg1: memref<8x32xf32, #tpu.memory_space<vmem>>, %arg2: memref<32x32xf32, #tpu.memory_space<vmem>>, %arg3: memref<32x64xf32, #tpu.memory_space<vmem>>, %arg4: memref<1x64xf32, #tpu.memory_space<vmem>>, %arg5: memref<1x64xf32, #tpu.memory_space<vmem>>, %arg6: memref<8x64xf32, #tpu.memory_space<vmem>>) attributes {dimension_semantics = [#tpu.dimension_semantics<parallel>], iteration_bounds = array<i64: 1>, scalar_prefetch = 0 : i64, scratch_operands = 0 : i64, tpu.core_type = #tpu.core_type<tc>, window_params = [{transform_indices = @transform_0, window_bounds = array<i64: 8, 32>}, {pipeline_mode = #tpu.pipeline_mode<synchronous>, transform_indices = @transform_1, window_bounds = array<i64: 32, 32>}, {pipeline_mode = #tpu.pipeline_mode<synchronous>, transform_indices = @transform_2, window_bounds = array<i64: 32, 64>}, {pipeline_mode = #tpu.pipeline_mode<synchronous>, transform_indices = @transform_3, window_bounds = array<i64: 1, 64>}, {pipeline_mode = #tpu.pipeline_mode<synchronous>, transform_indices = @transform_4, window_bounds = array<i64: 1, 64>}, {transform_indices = @transform_5, window_bounds = array<i64: 8, 64>}]} {
    %c0 = arith.constant 0 : index
    %c0_0 = arith.constant 0 : index
    %0 = vector.load %arg1[%c0, %c0_0] : memref<8x32xf32, #tpu.memory_space<vmem>>, vector<8x32xf32>
    %c0_1 = arith.constant 0 : index
    %c0_2 = arith.constant 0 : index
    %1 = vector.load %arg2[%c0_1, %c0_2] : memref<32x32xf32, #tpu.memory_space<vmem>>, vector<32x32xf32>
    %cst = arith.constant dense<0.000000e+00> : vector<8x32xf32>
    %2 = tpu.matmul %0, %1, %cst {dimension_numbers = #tpu.dot_dimension_numbers<[1], [0], [0], [1], [0, 0, 1, 1], [], []>} : vector<8x32xf32>, vector<32x32xf32>, vector<8x32xf32> -> vector<8x32xf32>
    %cst_3 = arith.constant 0.000000e+00 : f32
    %3 = vector.broadcast %cst_3 : f32 to vector<8x32xf32>
    %4 = arith.maximumf %2, %3 : vector<8x32xf32>
    %c0_4 = arith.constant 0 : index
    %c0_5 = arith.constant 0 : index
    %5 = vector.load %arg3[%c0_4, %c0_5] : memref<32x64xf32, #tpu.memory_space<vmem>>, vector<32x64xf32>
    %cst_6 = arith.constant dense<0.000000e+00> : vector<8x64xf32>
    %6 = tpu.matmul %4, %5, %cst_6 {dimension_numbers = #tpu.dot_dimension_numbers<[1], [0], [0], [1], [0, 0, 1, 1], [], []>} : vector<8x32xf32>, vector<32x64xf32>, vector<8x64xf32> -> vector<8x64xf32>
    %cst_7 = arith.constant 0.000000e+00 : f32
    %7 = vector.broadcast %cst_7 : f32 to vector<8x64xf32>
    %8 = arith.maximumf %6, %7 : vector<8x64xf32>
    %cst_8 = arith.constant dense<0.000000e+00> : vector<8xf32>
    %9 = vector.multi_reduction <add>, %8, %cst_8 [1] : vector<8x64xf32> to vector<8xf32>
    %10 = vector.shape_cast %9 : vector<8xf32> to vector<8x1xf32>
    %11 = arith.mulf %8, %8 : vector<8x64xf32>
    %cst_9 = arith.constant dense<0.000000e+00> : vector<8xf32>
    %12 = vector.multi_reduction <add>, %11, %cst_9 [1] : vector<8x64xf32> to vector<8xf32>
    %13 = vector.shape_cast %12 : vector<8xf32> to vector<8x1xf32>
    %cst_10 = arith.constant 1.562500e-02 : f32
    %14 = vector.broadcast %cst_10 : f32 to vector<8x1xf32>
    %15 = arith.mulf %10, %14 : vector<8x1xf32>
    %cst_11 = arith.constant 1.562500e-02 : f32
    %16 = vector.broadcast %cst_11 : f32 to vector<8x1xf32>
    %17 = arith.mulf %13, %16 : vector<8x1xf32>
    %18 = arith.mulf %15, %15 : vector<8x1xf32>
    %19 = arith.subf %17, %18 : vector<8x1xf32>
    %cst_12 = arith.constant 0.000000e+00 : f32
    %20 = vector.broadcast %cst_12 : f32 to vector<8x1xf32>
    %21 = arith.maximumf %19, %20 : vector<8x1xf32>
    %22 = vector.broadcast %15 : vector<8x1xf32> to vector<8x64xf32>
    %23 = arith.subf %8, %22 : vector<8x64xf32>
    %cst_13 = arith.constant 9.99999974E-6 : f32
    %24 = vector.broadcast %cst_13 : f32 to vector<8x1xf32>
    %25 = arith.addf %21, %24 : vector<8x1xf32>
    %26 = math.rsqrt %25 : vector<8x1xf32>
    %27 = vector.broadcast %26 : vector<8x1xf32> to vector<8x64xf32>
    %28 = arith.mulf %23, %27 : vector<8x64xf32>
    %c0_14 = arith.constant 0 : index
    %c0_15 = arith.constant 0 : index
    %29 = vector.load %arg4[%c0_14, %c0_15] : memref<1x64xf32, #tpu.memory_space<vmem>>, vector<1x64xf32>
    %30 = vector.broadcast %29 : vector<1x64xf32> to vector<8x64xf32>
    %31 = arith.mulf %28, %30 : vector<8x64xf32>
    %c0_16 = arith.constant 0 : index
    %c0_17 = arith.constant 0 : index
    %32 = vector.load %arg5[%c0_16, %c0_17] : memref<1x64xf32, #tpu.memory_space<vmem>>, vector<1x64xf32>
    %33 = vector.broadcast %32 : vector<1x64xf32> to vector<8x64xf32>
    %34 = arith.addf %31, %33 : vector<8x64xf32>
    %c0_18 = arith.constant 0 : index
    %c0_19 = arith.constant 0 : index
    %35 = vector.load %arg6[%c0_18, %c0_19] : memref<8x64xf32, #tpu.memory_space<vmem>>, vector<8x64xf32>
    tpu.vector_store %arg6[%c0_18, %c0_19], %34 {strides = array<i32>} : memref<8x64xf32, #tpu.memory_space<vmem>>, vector<8x64xf32>,
    return
  }
  func.func @transform_0(%arg0: i32) -> (i32, i32) {
    %c0_i32 = arith.constant 0 : i32
    %c0_i32_0 = arith.constant 0 : i32
    return %arg0, %c0_i32 : i32, i32
  }
  func.func @transform_1(%arg0: i32) -> (i32, i32) {
    %c0_i32 = arith.constant 0 : i32
    %c0_i32_0 = arith.constant 0 : i32
    %c0_i32_1 = arith.constant 0 : i32
    return %c0_i32, %c0_i32_0 : i32, i32
  }
  func.func @transform_2(%arg0: i32) -> (i32, i32) {
    %c0_i32 = arith.constant 0 : i32
    %c0_i32_0 = arith.constant 0 : i32
    %c0_i32_1 = arith.constant 0 : i32
    return %c0_i32, %c0_i32_0 : i32, i32
  }
  func.func @transform_3(%arg0: i32) -> (i32, i32) {
    %c0_i32 = arith.constant 0 : i32
    %c0_i32_0 = arith.constant 0 : i32
    %c0_i32_1 = arith.constant 0 : i32
    return %c0_i32, %c0_i32_0 : i32, i32
  }
  func.func @transform_4(%arg0: i32) -> (i32, i32) {
    %c0_i32 = arith.constant 0 : i32
    %c0_i32_0 = arith.constant 0 : i32
    %c0_i32_1 = arith.constant 0 : i32
    return %c0_i32, %c0_i32_0 : i32, i32
  }
  func.func @transform_5(%arg0: i32) -> (i32, i32) {
    %c0_i32 = arith.constant 0 : i32
    %c0_i32_0 = arith.constant 0 : i32
    return %arg0, %c0_i32 : i32, i32
  }
}

module attributes {stable_mosaic.version = 11 : i64} {
  func.func @decoder_block_kernel(%arg0: i32, %arg1: memref<8x32xf32, #tpu.memory_space<vmem>>, %arg2: memref<32x32xf32, #tpu.memory_space<vmem>>, %arg3: memref<32x64xf32, #tpu.memory_space<vmem>>, %arg4: memref<1x64xf32, #tpu.memory_space<vmem>>, %arg5: memref<1x64xf32, #tpu.memory_space<vmem>>, %arg6: memref<8x64xf32, #tpu.memory_space<vmem>>) attributes {dimension_semantics = [#tpu.dimension_semantics<parallel>], iteration_bounds = array<i64: 1>, scalar_prefetch = 0 : i64, scratch_operands = 0 : i64, tpu.core_type = #tpu.core_type<tc>, window_params = [{transform_indices = @transform_0, window_bounds = array<i64: 8, 32>}, {pipeline_mode = #tpu.pipeline_mode<synchronous>, transform_indices = @transform_1, window_bounds = array<i64: 32, 32>}, {pipeline_mode = #tpu.pipeline_mode<synchronous>, transform_indices = @transform_2, window_bounds = array<i64: 32, 64>}, {pipeline_mode = #tpu.pipeline_mode<synchronous>, transform_indices = @transform_3, window_bounds = array<i64: 1, 64>}, {pipeline_mode = #tpu.pipeline_mode<synchronous>, transform_indices = @transform_4, window_bounds = array<i64: 1, 64>}, {transform_indices = @transform_5, window_bounds = array<i64: 8, 64>}]} {
    %c0 = arith.constant 0 : index
    %c0_0 = arith.constant 0 : index
    %0 = vector.load %arg1[%c0, %c0_0] : memref<8x32xf32, #tpu.memory_space<vmem>>, vector<8x32xf32>
    %c0_1 = arith.constant 0 : index
    %c0_2 = arith.constant 0 : index
    %1 = vector.load %arg2[%c0_1, %c0_2] : memref<32x32xf32, #tpu.memory_space<vmem>>, vector<32x32xf32>
    %cst = arith.constant dense<0.000000e+00> : vector<8x32xf32>
    %2 = tpu.matmul %0, %1, %cst {dimension_numbers = #tpu.dot_dimension_numbers<[1], [0], [0], [1], [0, 0, 1, 1], [], []>} : vector<8x32xf32>, vector<32x32xf32>, vector<8x32xf32> -> vector<8x32xf32>
    %cst_3 = arith.constant 0.000000e+00 : f32
    %3 = vector.broadcast %cst_3 : f32 to vector<8x32xf32>
    %4 = arith.maximumf %2, %3 : vector<8x32xf32>
    %c0_4 = arith.constant 0 : index
    %c0_5 = arith.constant 0 : index
    %5 = vector.load %arg3[%c0_4, %c0_5] : memref<32x64xf32, #tpu.memory_space<vmem>>, vector<32x64xf32>
    %cst_6 = arith.constant dense<0.000000e+00> : vector<8x64xf32>
    %6 = tpu.matmul %4, %5, %cst_6 {dimension_numbers = #tpu.dot_dimension_numbers<[1], [0], [0], [1], [0, 0, 1, 1], [], []>} : vector<8x32xf32>, vector<32x64xf32>, vector<8x64xf32> -> vector<8x64xf32>
    %cst_7 = arith.constant 0.000000e+00 : f32
    %7 = vector.broadcast %cst_7 : f32 to vector<8x64xf32>
    %8 = arith.maximumf %6, %7 : vector<8x64xf32>
    %cst_8 = arith.constant dense<0.000000e+00> : vector<8xf32>
    %9 = vector.multi_reduction <add>, %8, %cst_8 [1] : vector<8x64xf32> to vector<8xf32>
    %10 = vector.shape_cast %9 : vector<8xf32> to vector<8x1xf32>
    %11 = arith.mulf %8, %8 : vector<8x64xf32>
    %cst_9 = arith.constant dense<0.000000e+00> : vector<8xf32>
    %12 = vector.multi_reduction <add>, %11, %cst_9 [1] : vector<8x64xf32> to vector<8xf32>
    %13 = vector.shape_cast %12 : vector<8xf32> to vector<8x1xf32>
    %cst_10 = arith.constant 1.562500e-02 : f32
    %14 = vector.broadcast %cst_10 : f32 to vector<8x1xf32>
    %15 = arith.mulf %10, %14 : vector<8x1xf32>
    %cst_11 = arith.constant 1.562500e-02 : f32
    %16 = vector.broadcast %cst_11 : f32 to vector<8x1xf32>
    %17 = arith.mulf %13, %16 : vector<8x1xf32>
    %18 = arith.mulf %15, %15 : vector<8x1xf32>
    %19 = arith.subf %17, %18 : vector<8x1xf32>
    %cst_12 = arith.constant 0.000000e+00 : f32
    %20 = vector.broadcast %cst_12 : f32 to vector<8x1xf32>
    %21 = arith.maximumf %19, %20 : vector<8x1xf32>
    %22 = vector.broadcast %15 : vector<8x1xf32> to vector<8x64xf32>
    %23 = arith.subf %8, %22 : vector<8x64xf32>
    %cst_13 = arith.constant 9.99999974E-6 : f32
    %24 = vector.broadcast %cst_13 : f32 to vector<8x1xf32>
    %25 = arith.addf %21, %24 : vector<8x1xf32>
    %26 = math.rsqrt %25 : vector<8x1xf32>
    %27 = vector.broadcast %26 : vector<8x1xf32> to vector<8x64xf32>
    %28 = arith.mulf %23, %27 : vector<8x64xf32>
    %c0_14 = arith.constant 0 : index
    %c0_15 = arith.constant 0 : index
    %29 = vector.load %arg4[%c0_14, %c0_15] : memref<1x64xf32, #tpu.memory_space<vmem>>, vector<1x64xf32>
    %30 = vector.broadcast %29 : vector<1x64xf32> to vector<8x64xf32>
    %31 = arith.mulf %28, %30 : vector<8x64xf32>
    %c0_16 = arith.constant 0 : index
    %c0_17 = arith.constant 0 : index
    %32 = vector.load %arg5[%c0_16, %c0_17] : memref<1x64xf32, #tpu.memory_space<vmem>>, vector<1x64xf32>
    %33 = vector.broadcast %32 : vector<1x64xf32> to vector<8x64xf32>
    %34 = arith.addf %31, %33 : vector<8x64xf32>
    %c0_18 = arith.constant 0 : index
    %c0_19 = arith.constant 0 : index
    %35 = vector.load %arg6[%c0_18, %c0_19] : memref<8x64xf32, #tpu.memory_space<vmem>>, vector<8x64xf32>
    tpu.vector_store %arg6[%c0_18, %c0_19], %34 {strides = array<i32>} : memref<8x64xf32, #tpu.memory_space<vmem>>, vector<8x64xf32>,
    return
  }
  func.func @transform_0(%arg0: i32) -> (i32, i32) {
    %c0_i32 = arith.constant 0 : i32
    %c0_i32_0 = arith.constant 0 : i32
    return %arg0, %c0_i32 : i32, i32
  }
  func.func @transform_1(%arg0: i32) -> (i32, i32) {
    %c0_i32 = arith.constant 0 : i32
    %c0_i32_0 = arith.constant 0 : i32
    %c0_i32_1 = arith.constant 0 : i32
    return %c0_i32, %c0_i32_0 : i32, i32
  }
  func.func @transform_2(%arg0: i32) -> (i32, i32) {
    %c0_i32 = arith.constant 0 : i32
    %c0_i32_0 = arith.constant 0 : i32
    %c0_i32_1 = arith.constant 0 : i32
    return %c0_i32, %c0_i32_0 : i32, i32
  }
  func.func @transform_3(%arg0: i32) -> (i32, i32) {
    %c0_i32 = arith.constant 0 : i32
    %c0_i32_0 = arith.constant 0 : i32
    %c0_i32_1 = arith.constant 0 : i32
    return %c0_i32, %c0_i32_0 : i32, i32
  }
  func.func @transform_4(%arg0: i32) -> (i32, i32) {
    %c0_i32 = arith.constant 0 : i32
    %c0_i32_0 = arith.constant 0 : i32
    %c0_i32_1 = arith.constant 0 : i32
    return %c0_i32, %c0_i32_0 : i32, i32
  }
  func.func @transform_5(%arg0: i32) -> (i32, i32) {
    %c0_i32 = arith.constant 0 : i32
    %c0_i32_0 = arith.constant 0 : i32
    return %arg0, %c0_i32 : i32, i32
  }
}

</mosaic_0001>

<llo_original>
// kernel: tpu_custom_call.1
$region0: #{tpu_custom_call.1}
  #allocation0 [shape = 'u32[]', space=smem, size = 0x4, offset = 0x4, fixed_abs, tag = 'smem constant byte address 0x4 - core index']
  #allocation1 [shape = 'u32[72,128]{1,0:T(1,128)}', space=vmem, size = 0x9000, scoped, tag = 'internal scratch']
  %s0 = inlined_call_operand.hbm [shape: f32[8,32], index: 0, kind: input, shape index: {}]
  %s1 = inlined_call_operand.hbm [shape: f32[32,32], index: 1, kind: input, shape index: {}]
  %s2 = inlined_call_operand.hbm [shape: f32[32,64], index: 2, kind: input, shape index: {}]
  %s3 = inlined_call_operand.vmem [shape: f32[1,64], index: 3, kind: input, shape index: {}]
  %s4 = inlined_call_operand.vmem [shape: f32[1,64], index: 4, kind: input, shape index: {}]
  %s5 = inlined_call_operand.hbm [shape: f32[8,64], index: 5, kind: output, shape index: {}]
  %s6 = sld [smem:[#allocation0]]
  $region42: #{tpu_custom_call.1} parent=0
    _
  %s8 = ssub.s32 1, %s6
  %s9 = scalar_select 0, %s8, %s6
  $region1: #{tpu_custom_call.1} parent=0
    #allocation2 [shape = 'u8[4096]{0}', space=vmem, size = 0x1000, scoped, tag = 'input window, operand 0, single buffered']
    #allocation3 [shape = 's32[1]{0}', space=sflag, size = 0x4, scoped, tag = 'scoped memory for tpu_custom_call.1']
    #allocation4 [shape = 's32[1]{0}', space=sflag, size = 0x4, scoped, tag = 'scoped memory for tpu_custom_call.1']
    #allocation5 [shape = 'u8[16384]{0}', space=vmem, size = 0x4000, scoped, tag = 'input window, operand 1, single buffered']
    #allocation6 [shape = 's32[1]{0}', space=sflag, size = 0x4, scoped, tag = 'scoped memory for tpu_custom_call.1']
    #allocation7 [shape = 'u8[16384]{0}', space=vmem, size = 0x4000, scoped, tag = 'input window, operand 2, single buffered']
    #allocation8 [shape = 'u8[4096]{0}', space=vmem, size = 0x1000, scoped, tag = 'output window, operand 0, single buffered']
    %10 = vsyncpa [#allocation3], 0
    %11 = vsyncpa [#allocation6], 0
    %12 = vsyncpa [#allocation4], 0
    // Predicated region
    $region2: #{tpu_custom_call.1} parent=1 // pred_check
      _
    $region3: #{tpu_custom_call.1} parent=1 // pred_check_branch
      %14 = sbr.rel (0) target = $region5
    $region4: #{tpu_custom_call.1} parent=1 // pred_region
      %16 = vsyncadd [#allocation3], 0
      %s18 = sshll.u32 %s0, 4
      %s19 = int_to_ptr.hbm [resolvable:$true] %s18
      %s20 = sshll.u32 [#allocation2], 4
      %s21 = int_to_ptr.vmem [resolvable:$true] %s20
      %23 = dma.hbm_to_vmem [thread:$0]  %s19, 128, %s21, [#allocation3]
    $region5: #{tpu_custom_call.1} parent=1 // pred_fallthru
      _
    // Predicated region
    $region6: #{tpu_custom_call.1} parent=1 // pred_check
      _
    $region7: #{tpu_custom_call.1} parent=1 // pred_check_branch
      %25 = sbr.rel (0) target = $region9
    $region8: #{tpu_custom_call.1} parent=1 // pred_region
      %27 = vsyncadd [#allocation6], 0
      %s28 = sshll.u32 %s1, 4
      %s29 = int_to_ptr.hbm [resolvable:$true] %s28
      %s30 = sshll.u32 [#allocation5], 4
      %s31 = int_to_ptr.vmem [resolvable:$true] %s30
      %36 = dma.hbm_to_vmem [thread:$0]  %s29, 512, %s31, [#allocation6], 128, 128, 8
    $region9: #{tpu_custom_call.1} parent=1 // pred_fallthru
      _
    // Predicated region
    $region10: #{tpu_custom_call.1} parent=1 // pred_check
      _
    $region11: #{tpu_custom_call.1} parent=1 // pred_check_branch
      %38 = sbr.rel (0) target = $region13
    $region12: #{tpu_custom_call.1} parent=1 // pred_region
      %40 = vsyncadd [#allocation6], 0
      %s41 = sshll.u32 %s2, 4
      %s42 = int_to_ptr.hbm [resolvable:$true] %s41
      %s43 = sshll.u32 [#allocation7], 4
      %s44 = int_to_ptr.vmem [resolvable:$true] %s43
      %49 = dma.hbm_to_vmem [thread:$0]  %s42, 512, %s44, [#allocation6], 128, 128, 8
    $region13: #{tpu_custom_call.1} parent=1 // pred_fallthru
      _
    // Predicated region
    $region14: #{tpu_custom_call.1} parent=1 // pred_check
      _
    $region15: #{tpu_custom_call.1} parent=1 // pred_check_branch
      %51 = sbr.rel (0) target = $region17
    $region16: #{tpu_custom_call.1} parent=1 // pred_region
      _
    $region17: #{tpu_custom_call.1} parent=1 // pred_fallthru
      _
    // Predicated region
    $region18: #{tpu_custom_call.1} parent=1 // pred_check
      _
    $region19: #{tpu_custom_call.1} parent=1 // pred_check_branch
      %53 = sbr.rel (0) target = $region21
    $region20: #{tpu_custom_call.1} parent=1 // pred_region
      _
    $region21: #{tpu_custom_call.1} parent=1 // pred_fallthru
      _
    // Predicated region
    $region22: #{tpu_custom_call.1} parent=1 // pred_check
      _
    $region23: #{tpu_custom_call.1} parent=1 // pred_check_branch
      %55 = sbr.rel (0) target = $region25
    $region24: #{tpu_custom_call.1} parent=1 // pred_region
      %57 = dma.done [#allocation3], 128
    $region25: #{tpu_custom_call.1} parent=1 // pred_fallthru
      _
    // Predicated region
    $region26: #{tpu_custom_call.1} parent=1 // pred_check
      _
    $region27: #{tpu_custom_call.1} parent=1 // pred_check_branch
      %59 = sbr.rel (0) target = $region29
    $region28: #{tpu_custom_call.1} parent=1 // pred_region
      %61 = dma.done [#allocation6], 512
    $region29: #{tpu_custom_call.1} parent=1 // pred_fallthru
      _
    // Predicated region
    $region30: #{tpu_custom_call.1} parent=1 // pred_check
      _
    $region31: #{tpu_custom_call.1} parent=1 // pred_check_branch
      %63 = sbr.rel (0) target = $region33
    $region32: #{tpu_custom_call.1} parent=1 // pred_region
      %65 = dma.done [#allocation6], 512
    $region33: #{tpu_custom_call.1} parent=1 // pred_fallthru
      _
    %v66 = vld [vmem:[#allocation2] sm:$0xff]
    %v67 = vld [vmem:[#allocation5] sm:$0xff]
    %v68 = vld [vmem:[#allocation5 + $0x8] sm:$0xff]
    %v69 = vld [vmem:[#allocation5 + $0x10] sm:$0xff]
    %v70 = vld [vmem:[#allocation5 + $0x18] sm:$0xff]
    %vm71 = vcmask 261120
    %v73 = vsel %vm71, %v66, 0
    %75 = vmatpush.msra.mxu0 0.0
    %76 = vmatpush.msra.mxu0 0.0
    %77 = vmatpush.msra.mxu0 0.0
    %78 = vmatpush.msra.mxu0 0.0
    %79 = vmatpush.msra.mxu0 0.0
    %80 = vmatpush.msra.mxu0 0.0
    %81 = vmatpush.msra.mxu0 0.0
    %82 = vmatpush.msra.mxu0 0.0
    %83 = vmatpush.msra.mxu0 0.0
    %84 = vmatpush.msra.mxu0 0.0
    %85 = vmatpush.msra.mxu0 0.0
    %86 = vmatpush.msra.mxu0 0.0
    %87 = vmatpush.msra.mxu0 %v70
    %88 = vmatpush.msra.mxu0 %v69
    %89 = vmatpush.msra.mxu0 %v68
    %90 = vmatpush.msra.mxu0 %v67
    %91 = vmatmul.f32.gmra.mxu0 %v73
    %v92 = vpop.f32.mrf.mxu0
    %v93 = vadd.f32 0.0, %v92
    %94 = vdwg.mxu0
    %v95 = vmax.f32 %v93, 0.0
    %v96 = vld [vmem:[#allocation7] sm:$0xff]
    %v97 = vld [vmem:[#allocation7 + $0x8] sm:$0xff]
    %v98 = vld [vmem:[#allocation7 + $0x10] sm:$0xff]
    %v99 = vld [vmem:[#allocation7 + $0x18] sm:$0xff]
    %v101 = vsel %vm71, %v95, 0
    %103 = vmatpush.msra.mxu0 0.0
    %104 = vmatpush.msra.mxu0 0.0
    %105 = vmatpush.msra.mxu0 0.0
    %106 = vmatpush.msra.mxu0 0.0
    %107 = vmatpush.msra.mxu0 0.0
    %108 = vmatpush.msra.mxu0 0.0
    %109 = vmatpush.msra.mxu0 0.0
    %110 = vmatpush.msra.mxu0 0.0
    %111 = vmatpush.msra.mxu0 0.0
    %112 = vmatpush.msra.mxu0 0.0
    %113 = vmatpush.msra.mxu0 0.0
    %114 = vmatpush.msra.mxu0 0.0
    %115 = vmatpush.msra.mxu0 %v99
    %116 = vmatpush.msra.mxu0 %v98
    %117 = vmatpush.msra.mxu0 %v97
    %118 = vmatpush.msra.mxu0 %v96
    %119 = vmatmul.f32.gmra.mxu0 %v101
    %v120 = vpop.f32.mrf.mxu0
    %v121 = vadd.f32 0.0, %v120
    %122 = vdwg.mxu0
    %v123 = vmax.f32 %v121, 0.0
    %vm124 = vcmask 523264
    %v125 = vsel %vm124, %v123, 0.0
    %126 = vadd.xlane.f32.xlu0 %v125
    %v127 = vpop.xlane.xlu0 %126
    %v128 = vmul.f32 %v123, %v123
    %v129 = vsel %vm124, %v128, 0.0
    %130 = vadd.xlane.f32.xlu0 %v129
    %v131 = vpop.xlane.xlu0 %130
    %v132 = vmul.f32 %v127, 0.015625
    %v133 = vmul.f32 %v131, 0.015625
    %v134 = vmul.f32 %v132, %v132
    %v135 = vsub.f32 %v133, %v134
    %v136 = vmax.f32 %v135, 0.0
    %v137 = vsub.f32 %v123, %v132
    %v138 = vadd.f32 %v136, 1e-05
    %v139 = vrsqrt.pop %v138
    %v140 = vmul.f32 %v139, %v138
    %v141 = vmul.f32 %v140, %v139
    %v142 = vmul.f32 0.5, %v141
    %v143 = vsub.f32 1.5, %v142
    %v144 = vmul.f32 %v139, %v143
    %vm145 = vweird.f32 %v138
    %vm146 = vweird.f32 %v139
    %vm147 = vmor %vm145, %vm146
    %v148 = vsel %vm147, %v139, %v144
    %v149 = vmul.f32 %v137, %v148
    %v150 = vld [vmem:[%s3] sm:$0x1]
    %v152 = vperm.slane %v150, 0
    %v154 = vmul.f32 %v149, %v152
    %v155 = vld [vmem:[%s4] sm:$0x1]
    %v157 = vperm.slane %v155, 0
    %v159 = vadd.f32 %v154, %v157
    %160 = vst.msk [vmem:[#allocation8] sm:$0xff] %vm124, %v159
    // Predicated region
    $region34: #{tpu_custom_call.1} parent=1 // pred_check
      _
    $region35: #{tpu_custom_call.1} parent=1 // pred_check_branch
      %162 = sbr.rel (0) target = $region37
    $region36: #{tpu_custom_call.1} parent=1 // pred_region
      %164 = vsyncadd [#allocation4], 0
      %s166 = sshll.u32 [#allocation8], 4
      %s167 = int_to_ptr.vmem [resolvable:$true] %s166
      %s168 = sshll.u32 %s5, 4
      %s169 = int_to_ptr.hbm [resolvable:$true] %s168
      %171 = dma.vmem_to_hbm [thread:$0]  %s167, 128, %s169, [#allocation4]
    $region37: #{tpu_custom_call.1} parent=1 // pred_fallthru
      _
    // Predicated region
    $region38: #{tpu_custom_call.1} parent=1 // pred_check
      _
    $region39: #{tpu_custom_call.1} parent=1 // pred_check_branch
      %173 = sbr.rel (0) target = $region41
    $region40: #{tpu_custom_call.1} parent=1 // pred_region
      %175 = dma.done [#allocation4], 128
    $region41: #{tpu_custom_call.1} parent=1 // pred_fallthru
      _
    %176 = vsyncpa [#allocation3], 1
    %177 = vsyncpa [#allocation6], 1
    %178 = vsyncpa [#allocation4], 1

// kernel: tpu_custom_call.1
$region0: #{tpu_custom_call.1}
  #allocation0 [shape = 'u32[]', space=smem, size = 0x4, offset = 0x4, fixed_abs, tag = 'smem constant byte address 0x4 - core index']
  #allocation1 [shape = 'u32[72,128]{1,0:T(1,128)}', space=vmem, size = 0x9000, scoped, tag = 'internal scratch']
  %s0 = inlined_call_operand.hbm [shape: f32[8,32], index: 0, kind: input, shape index: {}]
  %s1 = inlined_call_operand.hbm [shape: f32[32,32], index: 1, kind: input, shape index: {}]
  %s2 = inlined_call_operand.hbm [shape: f32[32,64], index: 2, kind: input, shape index: {}]
  %s3 = inlined_call_operand.vmem [shape: f32[1,64], index: 3, kind: input, shape index: {}]
  %s4 = inlined_call_operand.vmem [shape: f32[1,64], index: 4, kind: input, shape index: {}]
  %s5 = inlined_call_operand.hbm [shape: f32[8,64], index: 5, kind: output, shape index: {}]
  %s6 = sld [smem:[#allocation0]]
  $region42: #{tpu_custom_call.1} parent=0
    _
  %s8 = ssub.s32 1, %s6
  %s9 = scalar_select 0, %s8, %s6
  $region1: #{tpu_custom_call.1} parent=0
    #allocation2 [shape = 'u8[4096]{0}', space=vmem, size = 0x1000, scoped, tag = 'input window, operand 0, single buffered']
    #allocation3 [shape = 's32[1]{0}', space=sflag, size = 0x4, scoped, tag = 'scoped memory for tpu_custom_call.1']
    #allocation4 [shape = 's32[1]{0}', space=sflag, size = 0x4, scoped, tag = 'scoped memory for tpu_custom_call.1']
    #allocation5 [shape = 'u8[16384]{0}', space=vmem, size = 0x4000, scoped, tag = 'input window, operand 1, single buffered']
    #allocation6 [shape = 's32[1]{0}', space=sflag, size = 0x4, scoped, tag = 'scoped memory for tpu_custom_call.1']
    #allocation7 [shape = 'u8[16384]{0}', space=vmem, size = 0x4000, scoped, tag = 'input window, operand 2, single buffered']
    #allocation8 [shape = 'u8[4096]{0}', space=vmem, size = 0x1000, scoped, tag = 'output window, operand 0, single buffered']
    %10 = vsyncpa [#allocation3], 0
    %11 = vsyncpa [#allocation6], 0
    %12 = vsyncpa [#allocation4], 0
    // Predicated region
    $region2: #{tpu_custom_call.1} parent=1 // pred_check
      _
    $region3: #{tpu_custom_call.1} parent=1 // pred_check_branch
      %14 = sbr.rel (0) target = $region5
    $region4: #{tpu_custom_call.1} parent=1 // pred_region
      %16 = vsyncadd [#allocation3], 0
      %s18 = sshll.u32 %s0, 4
      %s19 = int_to_ptr.hbm [resolvable:$true] %s18
      %s20 = sshll.u32 [#allocation2], 4
      %s21 = int_to_ptr.vmem [resolvable:$true] %s20
      %23 = dma.hbm_to_vmem [thread:$0]  %s19, 128, %s21, [#allocation3]
    $region5: #{tpu_custom_call.1} parent=1 // pred_fallthru
      _
    // Predicated region
    $region6: #{tpu_custom_call.1} parent=1 // pred_check
      _
    $region7: #{tpu_custom_call.1} parent=1 // pred_check_branch
      %25 = sbr.rel (0) target = $region9
    $region8: #{tpu_custom_call.1} parent=1 // pred_region
      %27 = vsyncadd [#allocation6], 0
      %s28 = sshll.u32 %s1, 4
      %s29 = int_to_ptr.hbm [resolvable:$true] %s28
      %s30 = sshll.u32 [#allocation5], 4
      %s31 = int_to_ptr.vmem [resolvable:$true] %s30
      %36 = dma.hbm_to_vmem [thread:$0]  %s29, 512, %s31, [#allocation6], 128, 128, 8
    $region9: #{tpu_custom_call.1} parent=1 // pred_fallthru
      _
    // Predicated region
    $region10: #{tpu_custom_call.1} parent=1 // pred_check
      _
    $region11: #{tpu_custom_call.1} parent=1 // pred_check_branch
      %38 = sbr.rel (0) target = $region13
    $region12: #{tpu_custom_call.1} parent=1 // pred_region
      %40 = vsyncadd [#allocation6], 0
      %s41 = sshll.u32 %s2, 4
      %s42 = int_to_ptr.hbm [resolvable:$true] %s41
      %s43 = sshll.u32 [#allocation7], 4
      %s44 = int_to_ptr.vmem [resolvable:$true] %s43
      %49 = dma.hbm_to_vmem [thread:$0]  %s42, 512, %s44, [#allocation6], 128, 128, 8
    $region13: #{tpu_custom_call.1} parent=1 // pred_fallthru
      _
    // Predicated region
    $region14: #{tpu_custom_call.1} parent=1 // pred_check
      _
    $region15: #{tpu_custom_call.1} parent=1 // pred_check_branch
      %51 = sbr.rel (0) target = $region17
    $region16: #{tpu_custom_call.1} parent=1 // pred_region
      _
    $region17: #{tpu_custom_call.1} parent=1 // pred_fallthru
      _
    // Predicated region
    $region18: #{tpu_custom_call.1} parent=1 // pred_check
      _
    $region19: #{tpu_custom_call.1} parent=1 // pred_check_branch
      %53 = sbr.rel (0) target = $region21
    $region20: #{tpu_custom_call.1} parent=1 // pred_region
      _
    $region21: #{tpu_custom_call.1} parent=1 // pred_fallthru
      _
    // Predicated region
    $region22: #{tpu_custom_call.1} parent=1 // pred_check
      _
    $region23: #{tpu_custom_call.1} parent=1 // pred_check_branch
      %55 = sbr.rel (0) target = $region25
    $region24: #{tpu_custom_call.1} parent=1 // pred_region
      %57 = dma.done [#allocation3], 128
    $region25: #{tpu_custom_call.1} parent=1 // pred_fallthru
      _
    // Predicated region
    $region26: #{tpu_custom_call.1} parent=1 // pred_check
      _
    $region27: #{tpu_custom_call.1} parent=1 // pred_check_branch
      %59 = sbr.rel (0) target = $region29
    $region28: #{tpu_custom_call.1} parent=1 // pred_region
      %61 = dma.done [#allocation6], 512
    $region29: #{tpu_custom_call.1} parent=1 // pred_fallthru
      _
    // Predicated region
    $region30: #{tpu_custom_call.1} parent=1 // pred_check
      _
    $region31: #{tpu_custom_call.1} parent=1 // pred_check_branch
      %63 = sbr.rel (0) target = $region33
    $region32: #{tpu_custom_call.1} parent=1 // pred_region
      %65 = dma.done [#allocation6], 512
    $region33: #{tpu_custom_call.1} parent=1 // pred_fallthru
      _
    %v66 = vld [vmem:[#allocation2] sm:$0xff]
    %v67 = vld [vmem:[#allocation5] sm:$0xff]
    %v68 = vld [vmem:[#allocation5 + $0x8] sm:$0xff]
    %v69 = vld [vmem:[#allocation5 + $0x10] sm:$0xff]
    %v70 = vld [vmem:[#allocation5 + $0x18] sm:$0xff]
    %vm71 = vcmask 261120
    %v73 = vsel %vm71, %v66, 0
    %75 = vmatpush.msra.mxu0 0.0
    %76 = vmatpush.msra.mxu0 0.0
    %77 = vmatpush.msra.mxu0 0.0
    %78 = vmatpush.msra.mxu0 0.0
    %79 = vmatpush.msra.mxu0 0.0
    %80 = vmatpush.msra.mxu0 0.0
    %81 = vmatpush.msra.mxu0 0.0
    %82 = vmatpush.msra.mxu0 0.0
    %83 = vmatpush.msra.mxu0 0.0
    %84 = vmatpush.msra.mxu0 0.0
    %85 = vmatpush.msra.mxu0 0.0
    %86 = vmatpush.msra.mxu0 0.0
    %87 = vmatpush.msra.mxu0 %v70
    %88 = vmatpush.msra.mxu0 %v69
    %89 = vmatpush.msra.mxu0 %v68
    %90 = vmatpush.msra.mxu0 %v67
    %91 = vmatmul.f32.gmra.mxu0 %v73
    %v92 = vpop.f32.mrf.mxu0
    %v93 = vadd.f32 0.0, %v92
    %94 = vdwg.mxu0
    %v95 = vmax.f32 %v93, 0.0
    %v96 = vld [vmem:[#allocation7] sm:$0xff]
    %v97 = vld [vmem:[#allocation7 + $0x8] sm:$0xff]
    %v98 = vld [vmem:[#allocation7 + $0x10] sm:$0xff]
    %v99 = vld [vmem:[#allocation7 + $0x18] sm:$0xff]
    %v101 = vsel %vm71, %v95, 0
    %103 = vmatpush.msra.mxu0 0.0
    %104 = vmatpush.msra.mxu0 0.0
    %105 = vmatpush.msra.mxu0 0.0
    %106 = vmatpush.msra.mxu0 0.0
    %107 = vmatpush.msra.mxu0 0.0
    %108 = vmatpush.msra.mxu0 0.0
    %109 = vmatpush.msra.mxu0 0.0
    %110 = vmatpush.msra.mxu0 0.0
    %111 = vmatpush.msra.mxu0 0.0
    %112 = vmatpush.msra.mxu0 0.0
    %113 = vmatpush.msra.mxu0 0.0
    %114 = vmatpush.msra.mxu0 0.0
    %115 = vmatpush.msra.mxu0 %v99
    %116 = vmatpush.msra.mxu0 %v98
    %117 = vmatpush.msra.mxu0 %v97
    %118 = vmatpush.msra.mxu0 %v96
    %119 = vmatmul.f32.gmra.mxu0 %v101
    %v120 = vpop.f32.mrf.mxu0
    %v121 = vadd.f32 0.0, %v120
    %122 = vdwg.mxu0
    %v123 = vmax.f32 %v121, 0.0
    %vm124 = vcmask 523264
    %v125 = vsel %vm124, %v123, 0.0
    %126 = vadd.xlane.f32.xlu0 %v125
    %v127 = vpop.xlane.xlu0 %126
    %v128 = vmul.f32 %v123, %v123
    %v129 = vsel %vm124, %v128, 0.0
    %130 = vadd.xlane.f32.xlu0 %v129
    %v131 = vpop.xlane.xlu0 %130
    %v132 = vmul.f32 %v127, 0.015625
    %v133 = vmul.f32 %v131, 0.015625
    %v134 = vmul.f32 %v132, %v132
    %v135 = vsub.f32 %v133, %v134
    %v136 = vmax.f32 %v135, 0.0
    %v137 = vsub.f32 %v123, %v132
    %v138 = vadd.f32 %v136, 1e-05
    %v139 = vrsqrt.pop %v138
    %v140 = vmul.f32 %v139, %v138
    %v141 = vmul.f32 %v140, %v139
    %v142 = vmul.f32 0.5, %v141
    %v143 = vsub.f32 1.5, %v142
    %v144 = vmul.f32 %v139, %v143
    %vm145 = vweird.f32 %v138
    %vm146 = vweird.f32 %v139
    %vm147 = vmor %vm145, %vm146
    %v148 = vsel %vm147, %v139, %v144
    %v149 = vmul.f32 %v137, %v148
    %v150 = vld [vmem:[%s3] sm:$0x1]
    %v152 = vperm.slane %v150, 0
    %v154 = vmul.f32 %v149, %v152
    %v155 = vld [vmem:[%s4] sm:$0x1]
    %v157 = vperm.slane %v155, 0
    %v159 = vadd.f32 %v154, %v157
    %160 = vst.msk [vmem:[#allocation8] sm:$0xff] %vm124, %v159
    // Predicated region
    $region34: #{tpu_custom_call.1} parent=1 // pred_check
      _
    $region35: #{tpu_custom_call.1} parent=1 // pred_check_branch
      %162 = sbr.rel (0) target = $region37
    $region36: #{tpu_custom_call.1} parent=1 // pred_region
      %164 = vsyncadd [#allocation4], 0
      %s166 = sshll.u32 [#allocation8], 4
      %s167 = int_to_ptr.vmem [resolvable:$true] %s166
      %s168 = sshll.u32 %s5, 4
      %s169 = int_to_ptr.hbm [resolvable:$true] %s168
      %171 = dma.vmem_to_hbm [thread:$0]  %s167, 128, %s169, [#allocation4]
    $region37: #{tpu_custom_call.1} parent=1 // pred_fallthru
      _
    // Predicated region
    $region38: #{tpu_custom_call.1} parent=1 // pred_check
      _
    $region39: #{tpu_custom_call.1} parent=1 // pred_check_branch
      %173 = sbr.rel (0) target = $region41
    $region40: #{tpu_custom_call.1} parent=1 // pred_region
      %175 = dma.done [#allocation4], 128
    $region41: #{tpu_custom_call.1} parent=1 // pred_fallthru
      _
    %176 = vsyncpa [#allocation3], 1
    %177 = vsyncpa [#allocation6], 1
    %178 = vsyncpa [#allocation4], 1

</llo_original>
